<compile_context>
chip_gen: v7x
topology: tpu7x:2x2x1
jax: 0.10.0
libtpu: 0.0.40
codegen_flags: <defaults>
</compile_context>

<pallas_src>
import functools

import jax
import jax.numpy as jnp
from jax.experimental import pallas as pl
from jax.experimental.pallas import tpu as pltpu

N3 = 3        # real final width
N3_PAD = 128  # lane-dense padded width used for the final matmul inside VMEM


def _leaky_relu(x, slope=0.2):
    return jnp.where(x > 0, x, slope * x)


def type_classifier_kernel(x_ref, w1_ref, b1_ref, w2_ref, b2_ref, w3_ref, b3_ref, o_ref):
    # In-kernel cast to bf16 (no separate XLA cast pass on the wrapper side).
    x = x_ref[...].astype(jnp.bfloat16)
    # Layer 1: (tb, 512) bf16 @ (512, 256) bf16 -> f32 acc; bias + LeakyReLU(0.2) in f32
    h1 = jnp.dot(x, w1_ref[...], preferred_element_type=jnp.float32) + b1_ref[...]
    h1 = _leaky_relu(h1)
    # Layer 2: (tb, 256) @ (256, 128) -> f32 acc
    h2 = jnp.dot(h1.astype(jnp.bfloat16), w2_ref[...],
                 preferred_element_type=jnp.float32) + b2_ref[...]
    h2 = _leaky_relu(h2)
    # Layer 3: (tb, 128) @ (128, 128-padded) -> f32, no activation.
    h3 = jnp.dot(h2.astype(jnp.bfloat16), w3_ref[...],
                 preferred_element_type=jnp.float32) + b3_ref[...]
    # Store only the 3 real columns (narrow HBM writeback; masked vst is cheap
    # since HBM/DMA is the bound, not the store slot).
    o_ref[...] = h3[:, :N3].astype(o_ref.dtype)


def prepare_params(params):
    """One-time weight preprocessing: bf16 cast + lane-pad the 3-wide final layer."""
    w1 = params["w1"].astype(jnp.bfloat16)
    w2 = params["w2"].astype(jnp.bfloat16)
    b1 = params["b1"].astype(jnp.float32)
    b2 = params["b2"].astype(jnp.float32)
    w3 = jnp.zeros((128, N3_PAD), jnp.float32).at[:, :N3].set(params["w3"]).astype(jnp.bfloat16)
    b3 = jnp.zeros((1, N3_PAD), jnp.float32).at[:, :N3].set(params["b3"])
    return dict(w1=w1, b1=b1, w2=w2, b2=b2, w3=w3, b3=b3)


def type_classifier(x, prep, *, tb=2048):
    """x: (B, 512) float32 (or bf16). prep: output of prepare_params()."""
    B, D = x.shape
    assert D == 512

    # Batch tiling.
    if B <= tb:
        tb_eff = max(8, -(-B // 8) * 8)          # single block, rounded to sublane multiple
    else:
        tb_eff = tb
        # v7x has 2 TensorCores: prefer an even grid length so both get work.
        n_blocks = -(-B // tb_eff)
        if n_blocks > 1 and n_blocks % 2 == 1:
            tb_alt = -(-B // (n_blocks + 1))
            tb_alt = max(256, -(-tb_alt // 256) * 256)
            if tb_alt <= tb:
                tb_eff = tb_alt
    Bp = -(-B // tb_eff) * tb_eff                # padded batch (multiple of tb_eff)

    xin = x
    if Bp != B:
        xin = jnp.pad(xin, ((0, Bp - B), (0, 0)))

    grid = (Bp // tb_eff,)
    full = lambda *shape: pl.BlockSpec(shape, lambda i: (0,) * len(shape))

    out = pl.pallas_call(
        type_classifier_kernel,
        out_shape=jax.ShapeDtypeStruct((Bp, N3), jnp.float32),
        grid_spec=pltpu.PrefetchScalarGridSpec(
            num_scalar_prefetch=0,
            grid=grid,
            in_specs=[
                pl.BlockSpec((tb_eff, 512), lambda i: (i, 0)),   # x tile over batch (f32)
                full(512, 256), full(1, 256),                    # layer 1 params (resident)
                full(256, 128), full(1, 128),                    # layer 2 params
                full(128, N3_PAD), full(1, N3_PAD),              # layer 3 params (lane-padded)
            ],
            # Narrow output block: last dim == full array dim (3) is legal.
            out_specs=pl.BlockSpec((tb_eff, N3), lambda i: (i, 0)),
        ),
        compiler_params=pltpu.CompilerParams(
            dimension_semantics=("parallel",)),
    )(xin, prep["w1"], prep["b1"], prep["w2"], prep["b2"], prep["w3"], prep["b3"])

    return out[:B] if Bp != B else out


def init_params(key):
    """Deterministic init mimicking nn.Linear's uniform(-1/sqrt(in), 1/sqrt(in))."""
    ks = jax.random.split(key, 6)

    def linear(kw, kb, in_dim, out_dim):
        bound = 1.0 / jnp.sqrt(in_dim)
        w = jax.random.uniform(kw, (in_dim, out_dim), jnp.float32, -bound, bound)
        b = jax.random.uniform(kb, (1, out_dim), jnp.float32, -bound, bound)
        return w, b

    w1, b1 = linear(ks[0], ks[1], 512, 256)
    w2, b2 = linear(ks[2], ks[3], 256, 128)
    w3, b3 = linear(ks[4], ks[5], 128, 3)
    return dict(w1=w1, b1=b1, w2=w2, b2=b2, w3=w3, b3=b3)


def reference(x, p):
    h1 = _leaky_relu(x @ p["w1"] + p["b1"])
    h2 = _leaky_relu(h1 @ p["w2"] + p["b2"])
    return h2 @ p["w3"] + p["b3"]


if __name__ == "__main__":
    key = jax.random.PRNGKey(0)
    kx, kp = jax.random.split(key)
    B = 16
    x = jax.random.normal(kx, (B, 512), jnp.float32)
    params = init_params(kp)

    # Weight prep hoisted out of the per-call path; whole forward under one jit.
    prep = prepare_params(params)
    fwd = jax.jit(functools.partial(type_classifier, tb=2048))

    out = fwd(x, prep)
    out = jax.block_until_ready(out)

    ref = reference(x, params)
    assert out.shape == (B, 3), out.shape
    # bf16 matmul inputs -> loosened tolerance vs. the f32 reference.
    assert jnp.allclose(out, ref, atol=5e-2, rtol=5e-2), (
        f"max abs err {jnp.max(jnp.abs(out - ref))}")
    print("KERNEL_OK")
</pallas_src>

<mosaic_0001>
module attributes {stable_mosaic.version = 11 : i64} {
  func.func @type_classifier_kernel(%arg0: i32, %arg1: memref<16x512xf32, #tpu.memory_space<vmem>>, %arg2: memref<512x256xbf16, #tpu.memory_space<vmem>>, %arg3: memref<1x256xf32, #tpu.memory_space<vmem>>, %arg4: memref<256x128xbf16, #tpu.memory_space<vmem>>, %arg5: memref<1x128xf32, #tpu.memory_space<vmem>>, %arg6: memref<128x128xbf16, #tpu.memory_space<vmem>>, %arg7: memref<1x128xf32, #tpu.memory_space<vmem>>, %arg8: memref<16x3xf32, #tpu.memory_space<vmem>>) attributes {dimension_semantics = [#tpu.dimension_semantics<parallel>], iteration_bounds = array<i64: 1>, scalar_prefetch = 0 : i64, scratch_operands = 0 : i64, tpu.core_type = #tpu.core_type<tc>, window_params = [{transform_indices = @transform_0, window_bounds = array<i64: 16, 512>}, {pipeline_mode = #tpu.pipeline_mode<synchronous>, transform_indices = @transform_1, window_bounds = array<i64: 512, 256>}, {pipeline_mode = #tpu.pipeline_mode<synchronous>, transform_indices = @transform_2, window_bounds = array<i64: 1, 256>}, {pipeline_mode = #tpu.pipeline_mode<synchronous>, transform_indices = @transform_3, window_bounds = array<i64: 256, 128>}, {pipeline_mode = #tpu.pipeline_mode<synchronous>, transform_indices = @transform_4, window_bounds = array<i64: 1, 128>}, {pipeline_mode = #tpu.pipeline_mode<synchronous>, transform_indices = @transform_5, window_bounds = array<i64: 128, 128>}, {pipeline_mode = #tpu.pipeline_mode<synchronous>, transform_indices = @transform_6, window_bounds = array<i64: 1, 128>}, {transform_indices = @transform_7, window_bounds = array<i64: 16, 3>}]} {
    %c0 = arith.constant 0 : index
    %c0_0 = arith.constant 0 : index
    %0 = vector.load %arg1[%c0, %c0_0] : memref<16x512xf32, #tpu.memory_space<vmem>>, vector<16x512xf32>
    %1 = arith.truncf %0 : vector<16x512xf32> to vector<16x512xbf16>
    %c0_1 = arith.constant 0 : index
    %c0_2 = arith.constant 0 : index
    %2 = vector.load %arg2[%c0_1, %c0_2] : memref<512x256xbf16, #tpu.memory_space<vmem>>, vector<512x256xbf16>
    %cst = arith.constant dense<0.000000e+00> : vector<16x256xf32>
    %3 = tpu.matmul %1, %2, %cst {dimension_numbers = #tpu.dot_dimension_numbers<[1], [0], [0], [1], [0, 0, 1, 1], [], []>} : vector<16x512xbf16>, vector<512x256xbf16>, vector<16x256xf32> -> vector<16x256xf32>
    %c0_3 = arith.constant 0 : index
    %c0_4 = arith.constant 0 : index
    %4 = vector.load %arg3[%c0_3, %c0_4] : memref<1x256xf32, #tpu.memory_space<vmem>>, vector<1x256xf32>
    %5 = vector.broadcast %4 : vector<1x256xf32> to vector<16x256xf32>
    %6 = arith.addf %3, %5 : vector<16x256xf32>
    %cst_5 = arith.constant 0.000000e+00 : f32
    %7 = vector.broadcast %cst_5 : f32 to vector<16x256xf32>
    %8 = arith.cmpf ogt, %6, %7 : vector<16x256xf32>
    %cst_6 = arith.constant 2.000000e-01 : f32
    %9 = vector.broadcast %cst_6 : f32 to vector<16x256xf32>
    %10 = arith.mulf %9, %6 : vector<16x256xf32>
    %11 = arith.select %8, %6, %10 : vector<16x256xi1>, vector<16x256xf32>
    %12 = arith.truncf %11 : vector<16x256xf32> to vector<16x256xbf16>
    %c0_7 = arith.constant 0 : index
    %c0_8 = arith.constant 0 : index
    %13 = vector.load %arg4[%c0_7, %c0_8] : memref<256x128xbf16, #tpu.memory_space<vmem>>, vector<256x128xbf16>
    %cst_9 = arith.constant dense<0.000000e+00> : vector<16x128xf32>
    %14 = tpu.matmul %12, %13, %cst_9 {dimension_numbers = #tpu.dot_dimension_numbers<[1], [0], [0], [1], [0, 0, 1, 1], [], []>} : vector<16x256xbf16>, vector<256x128xbf16>, vector<16x128xf32> -> vector<16x128xf32>
    %c0_10 = arith.constant 0 : index
    %c0_11 = arith.constant 0 : index
    %15 = vector.load %arg5[%c0_10, %c0_11] : memref<1x128xf32, #tpu.memory_space<vmem>>, vector<1x128xf32>
    %16 = vector.broadcast %15 : vector<1x128xf32> to vector<16x128xf32>
    %17 = arith.addf %14, %16 : vector<16x128xf32>
    %cst_12 = arith.constant 0.000000e+00 : f32
    %18 = vector.broadcast %cst_12 : f32 to vector<16x128xf32>
    %19 = arith.cmpf ogt, %17, %18 : vector<16x128xf32>
    %cst_13 = arith.constant 2.000000e-01 : f32
    %20 = vector.broadcast %cst_13 : f32 to vector<16x128xf32>
    %21 = arith.mulf %20, %17 : vector<16x128xf32>
    %22 = arith.select %19, %17, %21 : vector<16x128xi1>, vector<16x128xf32>
    %23 = arith.truncf %22 : vector<16x128xf32> to vector<16x128xbf16>
    %c0_14 = arith.constant 0 : index
    %c0_15 = arith.constant 0 : index
    %24 = vector.load %arg6[%c0_14, %c0_15] : memref<128x128xbf16, #tpu.memory_space<vmem>>, vector<128x128xbf16>
    %cst_16 = arith.constant dense<0.000000e+00> : vector<16x128xf32>
    %25 = tpu.matmul %23, %24, %cst_16 {dimension_numbers = #tpu.dot_dimension_numbers<[1], [0], [0], [1], [0, 0, 1, 1], [], []>} : vector<16x128xbf16>, vector<128x128xbf16>, vector<16x128xf32> -> vector<16x128xf32>
    %c0_17 = arith.constant 0 : index
    %c0_18 = arith.constant 0 : index
    %26 = vector.load %arg7[%c0_17, %c0_18] : memref<1x128xf32, #tpu.memory_space<vmem>>, vector<1x128xf32>
    %27 = vector.broadcast %26 : vector<1x128xf32> to vector<16x128xf32>
    %28 = arith.addf %25, %27 : vector<16x128xf32>
    %29 = vector.extract_strided_slice %28 {offsets = [0, 0], sizes = [16, 3], strides = [1, 1]} : vector<16x128xf32> to vector<16x3xf32>
    %c0_19 = arith.constant 0 : index
    %c0_20 = arith.constant 0 : index
    %30 = vector.load %arg8[%c0_19, %c0_20] : memref<16x3xf32, #tpu.memory_space<vmem>>, vector<16x3xf32>
    tpu.vector_store %arg8[%c0_19, %c0_20], %29 {strides = array<i32>} : memref<16x3xf32, #tpu.memory_space<vmem>>, vector<16x3xf32>,
    return
  }
  func.func @transform_0(%arg0: i32) -> (i32, i32) {
    %c0_i32 = arith.constant 0 : i32
    %c0_i32_0 = arith.constant 0 : i32
    return %arg0, %c0_i32 : i32, i32
  }
  func.func @transform_1(%arg0: i32) -> (i32, i32) {
    %c0_i32 = arith.constant 0 : i32
    %c0_i32_0 = arith.constant 0 : i32
    %c0_i32_1 = arith.constant 0 : i32
    return %c0_i32, %c0_i32_0 : i32, i32
  }
  func.func @transform_2(%arg0: i32) -> (i32, i32) {
    %c0_i32 = arith.constant 0 : i32
    %c0_i32_0 = arith.constant 0 : i32
    %c0_i32_1 = arith.constant 0 : i32
    return %c0_i32, %c0_i32_0 : i32, i32
  }
  func.func @transform_3(%arg0: i32) -> (i32, i32) {
    %c0_i32 = arith.constant 0 : i32
    %c0_i32_0 = arith.constant 0 : i32
    %c0_i32_1 = arith.constant 0 : i32
    return %c0_i32, %c0_i32_0 : i32, i32
  }
  func.func @transform_4(%arg0: i32) -> (i32, i32) {
    %c0_i32 = arith.constant 0 : i32
    %c0_i32_0 = arith.constant 0 : i32
    %c0_i32_1 = arith.constant 0 : i32
    return %c0_i32, %c0_i32_0 : i32, i32
  }
  func.func @transform_5(%arg0: i32) -> (i32, i32) {
    %c0_i32 = arith.constant 0 : i32
    %c0_i32_0 = arith.constant 0 : i32
    %c0_i32_1 = arith.constant 0 : i32
    return %c0_i32, %c0_i32_0 : i32, i32
  }
  func.func @transform_6(%arg0: i32) -> (i32, i32) {
    %c0_i32 = arith.constant 0 : i32
    %c0_i32_0 = arith.constant 0 : i32
    %c0_i32_1 = arith.constant 0 : i32
    return %c0_i32, %c0_i32_0 : i32, i32
  }
  func.func @transform_7(%arg0: i32) -> (i32, i32) {
    %c0_i32 = arith.constant 0 : i32
    %c0_i32_0 = arith.constant 0 : i32
    return %arg0, %c0_i32 : i32, i32
  }
}

</mosaic_0001>

<llo_original>
// kernel: type_classifier.1
$region0: #{type_classifier.1}
  #allocation0 [shape = 'u32[]', space=smem, size = 0x4, offset = 0x4, fixed_abs, tag = 'smem constant byte address 0x4 - core index']
  #allocation1 [shape = 'u32[144,128]{1,0:T(1,128)}', space=vmem, size = 0x12000, scoped, tag = 'internal scratch']
  %s0 = inlined_call_operand.hbm [shape: f32[16,512], index: 0, kind: input, shape index: {}]
  %s1 = inlined_call_operand.hbm [shape: bf16[512,256], index: 1, kind: input, shape index: {}]
  %s2 = inlined_call_operand.vmem [shape: f32[1,256], index: 2, kind: input, shape index: {}]
  %s3 = inlined_call_operand.hbm [shape: bf16[256,128], index: 3, kind: input, shape index: {}]
  %s4 = inlined_call_operand.vmem [shape: f32[1,128], index: 4, kind: input, shape index: {}]
  %s5 = inlined_call_operand.hbm [shape: bf16[128,128], index: 5, kind: input, shape index: {}]
  %s6 = inlined_call_operand.vmem [shape: f32[1,128], index: 6, kind: input, shape index: {}]
  %s7 = inlined_call_operand.vmem [shape: f32[16,3], index: 7, kind: output, shape index: {}]
  %s8 = sld [smem:[#allocation0]]
  $region54: #{type_classifier.1} parent=0
    _
  %s10 = ssub.s32 1, %s8
  %s11 = scalar_select 0, %s10, %s8
  $region1: #{type_classifier.1} parent=0
    #allocation2 [shape = 'u8[32768]{0}', space=vmem, size = 0x8000, scoped, tag = 'input window, operand 0, single buffered']
    #allocation3 [shape = 's32[1]{0}', space=sflag, size = 0x4, scoped, tag = 'scoped memory for type_classifier.1']
    #allocation4 [shape = 'u8[262144]{0}', space=vmem, size = 0x40000, scoped, tag = 'input window, operand 1, single buffered']
    #allocation5 [shape = 's32[1]{0}', space=sflag, size = 0x4, scoped, tag = 'scoped memory for type_classifier.1']
    #allocation6 [shape = 'u8[65536]{0}', space=vmem, size = 0x10000, scoped, tag = 'input window, operand 3, single buffered']
    #allocation7 [shape = 'u8[32768]{0}', space=vmem, size = 0x8000, scoped, tag = 'input window, operand 5, single buffered']
    #allocation8 [shape = 's32[1]{0}', space=sflag, size = 0x4, scoped, tag = 'scoped memory for type_classifier.1']
    %12 = vsyncpa [#allocation3], 0
    %13 = vsyncpa [#allocation5], 0
    %14 = vsyncpa [#allocation8], 0
    // Predicated region
    $region2: #{type_classifier.1} parent=1 // pred_check
      _
    $region3: #{type_classifier.1} parent=1 // pred_check_branch
      %16 = sbr.rel (0) target = $region5
    $region4: #{type_classifier.1} parent=1 // pred_region
      %s18 = ssub.s32 1024, 1024
      %19 = vsyncadd [#allocation3], %s18
      %s20 = sshll.u32 [#allocation2], 4
      %s21 = int_to_ptr.vmem [resolvable:$true] %s20
      %26 = dma.hbm_to_vmem [thread:$0]  %s0, 1024, %s21, [#allocation3], 512, 512, 32
    $region5: #{type_classifier.1} parent=1 // pred_fallthru
      _
    // Predicated region
    $region6: #{type_classifier.1} parent=1 // pred_check
      _
    $region7: #{type_classifier.1} parent=1 // pred_check_branch
      %28 = sbr.rel (0) target = $region9
    $region8: #{type_classifier.1} parent=1 // pred_region
      %s30 = ssub.s32 8192, 8192
      %31 = vsyncadd [#allocation5], %s30
      %s32 = sshll.u32 [#allocation4], 4
      %s33 = int_to_ptr.vmem [resolvable:$true] %s32
      %38 = dma.hbm_to_vmem [thread:$0]  %s1, 8192, %s33, [#allocation5], 128, 128, 8
    $region9: #{type_classifier.1} parent=1 // pred_fallthru
      _
    // Predicated region
    $region10: #{type_classifier.1} parent=1 // pred_check
      _
    $region11: #{type_classifier.1} parent=1 // pred_check_branch
      %40 = sbr.rel (0) target = $region13
    $region12: #{type_classifier.1} parent=1 // pred_region
      _
    $region13: #{type_classifier.1} parent=1 // pred_fallthru
      _
    // Predicated region
    $region14: #{type_classifier.1} parent=1 // pred_check
      _
    $region15: #{type_classifier.1} parent=1 // pred_check_branch
      %42 = sbr.rel (0) target = $region17
    $region16: #{type_classifier.1} parent=1 // pred_region
      %s44 = ssub.s32 2048, 2048
      %45 = vsyncadd [#allocation5], %s44
      %s46 = sshll.u32 [#allocation6], 4
      %s47 = int_to_ptr.vmem [resolvable:$true] %s46
      %52 = dma.hbm_to_vmem [thread:$0]  %s3, 2048, %s47, [#allocation5], 64, 64, 4
    $region17: #{type_classifier.1} parent=1 // pred_fallthru
      _
    // Predicated region
    $region18: #{type_classifier.1} parent=1 // pred_check
      _
    $region19: #{type_classifier.1} parent=1 // pred_check_branch
      %54 = sbr.rel (0) target = $region21
    $region20: #{type_classifier.1} parent=1 // pred_region
      _
    $region21: #{type_classifier.1} parent=1 // pred_fallthru
      _
    // Predicated region
    $region22: #{type_classifier.1} parent=1 // pred_check
      _
    $region23: #{type_classifier.1} parent=1 // pred_check_branch
      %56 = sbr.rel (0) target = $region25
    $region24: #{type_classifier.1} parent=1 // pred_region
      %s58 = ssub.s32 1024, 1024
      %59 = vsyncadd [#allocation8], %s58
      %s60 = sshll.u32 [#allocation7], 4
      %s61 = int_to_ptr.vmem [resolvable:$true] %s60
      %66 = dma.hbm_to_vmem [thread:$0]  %s5, 1024, %s61, [#allocation8], 64, 64, 4
    $region25: #{type_classifier.1} parent=1 // pred_fallthru
      _
    // Predicated region
    $region26: #{type_classifier.1} parent=1 // pred_check
      _
    $region27: #{type_classifier.1} parent=1 // pred_check_branch
      %68 = sbr.rel (0) target = $region29
    $region28: #{type_classifier.1} parent=1 // pred_region
      _
    $region29: #{type_classifier.1} parent=1 // pred_fallthru
      _
    // Predicated region
    $region30: #{type_classifier.1} parent=1 // pred_check
      _
    $region31: #{type_classifier.1} parent=1 // pred_check_branch
      %70 = sbr.rel (0) target = $region33
    $region32: #{type_classifier.1} parent=1 // pred_region
      %71 = dma.done [#allocation3], 1024
    $region33: #{type_classifier.1} parent=1 // pred_fallthru
      _
    // Predicated region
    $region34: #{type_classifier.1} parent=1 // pred_check
      _
    $region35: #{type_classifier.1} parent=1 // pred_check_branch
      %73 = sbr.rel (0) target = $region37
    $region36: #{type_classifier.1} parent=1 // pred_region
      %74 = dma.done [#allocation5], 8192
    $region37: #{type_classifier.1} parent=1 // pred_fallthru
      _
    // Predicated region
    $region38: #{type_classifier.1} parent=1 // pred_check
      _
    $region39: #{type_classifier.1} parent=1 // pred_check_branch
      %76 = sbr.rel (0) target = $region41
    $region40: #{type_classifier.1} parent=1 // pred_region
      %77 = dma.done [#allocation5], 2048
    $region41: #{type_classifier.1} parent=1 // pred_fallthru
      _
    // Predicated region
    $region42: #{type_classifier.1} parent=1 // pred_check
      _
    $region43: #{type_classifier.1} parent=1 // pred_check_branch
      %79 = sbr.rel (0) target = $region45
    $region44: #{type_classifier.1} parent=1 // pred_region
      %80 = dma.done [#allocation8], 1024
    $region45: #{type_classifier.1} parent=1 // pred_fallthru
      _
    %v82 = vld [vmem:[#allocation2] sm:$0xff]
    %v83 = vld [vmem:[#allocation2 + $0x8] sm:$0xff]
    %v84 = vld [vmem:[#allocation2 + $0x10] sm:$0xff]
    %v85 = vld [vmem:[#allocation2 + $0x18] sm:$0xff]
    %v86 = vld [vmem:[#allocation2 + $0x20] sm:$0xff]
    %v87 = vld [vmem:[#allocation2 + $0x28] sm:$0xff]
    %v88 = vld [vmem:[#allocation2 + $0x30] sm:$0xff]
    %v89 = vld [vmem:[#allocation2 + $0x38] sm:$0xff]
    %v90 = vpack.c.bf16 %v86, %v82
    %v91 = vpack.c.bf16 %v87, %v83
    %v92 = vpack.c.bf16 %v88, %v84
    %v93 = vpack.c.bf16 %v89, %v85
    %v94 = vld [vmem:[#allocation4] sm:$0xff]
    %v95 = vld [vmem:[#allocation4 + $0x8] sm:$0xff]
    %v96 = vld [vmem:[#allocation4 + $0x10] sm:$0xff]
    %v97 = vld [vmem:[#allocation4 + $0x18] sm:$0xff]
    %v98 = vld [vmem:[#allocation4 + $0x20] sm:$0xff]
    %v99 = vld [vmem:[#allocation4 + $0x28] sm:$0xff]
    %v100 = vld [vmem:[#allocation4 + $0x30] sm:$0xff]
    %v101 = vld [vmem:[#allocation4 + $0x38] sm:$0xff]
    %v102 = vld [vmem:[#allocation4 + $0x40] sm:$0xff]
    %v103 = vld [vmem:[#allocation4 + $0x48] sm:$0xff]
    %v104 = vld [vmem:[#allocation4 + $0x50] sm:$0xff]
    %v105 = vld [vmem:[#allocation4 + $0x58] sm:$0xff]
    %v106 = vld [vmem:[#allocation4 + $0x60] sm:$0xff]
    %v107 = vld [vmem:[#allocation4 + $0x68] sm:$0xff]
    %v108 = vld [vmem:[#allocation4 + $0x70] sm:$0xff]
    %v109 = vld [vmem:[#allocation4 + $0x78] sm:$0xff]
    %v110 = vld [vmem:[#allocation4 + $0x80] sm:$0xff]
    %v111 = vld [vmem:[#allocation4 + $0x88] sm:$0xff]
    %v112 = vld [vmem:[#allocation4 + $0x90] sm:$0xff]
    %v113 = vld [vmem:[#allocation4 + $0x98] sm:$0xff]
    %v114 = vld [vmem:[#allocation4 + $0xa0] sm:$0xff]
    %v115 = vld [vmem:[#allocation4 + $0xa8] sm:$0xff]
    %v116 = vld [vmem:[#allocation4 + $0xb0] sm:$0xff]
    %v117 = vld [vmem:[#allocation4 + $0xb8] sm:$0xff]
    %v118 = vld [vmem:[#allocation4 + $0xc0] sm:$0xff]
    %v119 = vld [vmem:[#allocation4 + $0xc8] sm:$0xff]
    %v120 = vld [vmem:[#allocation4 + $0xd0] sm:$0xff]
    %v121 = vld [vmem:[#allocation4 + $0xd8] sm:$0xff]
    %v122 = vld [vmem:[#allocation4 + $0xe0] sm:$0xff]
    %v123 = vld [vmem:[#allocation4 + $0xe8] sm:$0xff]
    %v124 = vld [vmem:[#allocation4 + $0xf0] sm:$0xff]
    %v125 = vld [vmem:[#allocation4 + $0xf8] sm:$0xff]
    %v126 = vld [vmem:[#allocation4 + $0x100] sm:$0xff]
    %v127 = vld [vmem:[#allocation4 + $0x108] sm:$0xff]
    %v128 = vld [vmem:[#allocation4 + $0x110] sm:$0xff]
    %v129 = vld [vmem:[#allocation4 + $0x118] sm:$0xff]
    %v130 = vld [vmem:[#allocation4 + $0x120] sm:$0xff]
    %v131 = vld [vmem:[#allocation4 + $0x128] sm:$0xff]
    %v132 = vld [vmem:[#allocation4 + $0x130] sm:$0xff]
    %v133 = vld [vmem:[#allocation4 + $0x138] sm:$0xff]
    %v134 = vld [vmem:[#allocation4 + $0x140] sm:$0xff]
    %v135 = vld [vmem:[#allocation4 + $0x148] sm:$0xff]
    %v136 = vld [vmem:[#allocation4 + $0x150] sm:$0xff]
    %v137 = vld [vmem:[#allocation4 + $0x158] sm:$0xff]
    %v138 = vld [vmem:[#allocation4 + $0x160] sm:$0xff]
    %v139 = vld [vmem:[#allocation4 + $0x168] sm:$0xff]
    %v140 = vld [vmem:[#allocation4 + $0x170] sm:$0xff]
    %v141 = vld [vmem:[#allocation4 + $0x178] sm:$0xff]
    %v142 = vld [vmem:[#allocation4 + $0x180] sm:$0xff]
    %v143 = vld [vmem:[#allocation4 + $0x188] sm:$0xff]
    %v144 = vld [vmem:[#allocation4 + $0x190] sm:$0xff]
    %v145 = vld [vmem:[#allocation4 + $0x198] sm:$0xff]
    %v146 = vld [vmem:[#allocation4 + $0x1a0] sm:$0xff]
    %v147 = vld [vmem:[#allocation4 + $0x1a8] sm:$0xff]
    %v148 = vld [vmem:[#allocation4 + $0x1b0] sm:$0xff]
    %v149 = vld [vmem:[#allocation4 + $0x1b8] sm:$0xff]
    %v150 = vld [vmem:[#allocation4 + $0x1c0] sm:$0xff]
    %v151 = vld [vmem:[#allocation4 + $0x1c8] sm:$0xff]
    %v152 = vld [vmem:[#allocation4 + $0x1d0] sm:$0xff]
    %v153 = vld [vmem:[#allocation4 + $0x1d8] sm:$0xff]
    %v154 = vld [vmem:[#allocation4 + $0x1e0] sm:$0xff]
    %v155 = vld [vmem:[#allocation4 + $0x1e8] sm:$0xff]
    %v156 = vld [vmem:[#allocation4 + $0x1f0] sm:$0xff]
    %v157 = vld [vmem:[#allocation4 + $0x1f8] sm:$0xff]
    %v158 = vld [vmem:[%s2] sm:$0x3]
    %v160 = vlaneseq
    %v161 = vshrl.u32 %v160, 7
    %v162 = vsub.s32 0, %v161
    %v163 = vrot.slane %v158, %v162
    %v164 = vlaneseq
    %v165 = vshrl.u32 %v164, 7
    %v166 = vsub.s32 1, %v165
    %v167 = vrot.slane %v158, %v166
    %v234 = vunpack.c.l.b16 %v94
    %v235 = vunpack.c.h.b16 %v94
    %v236 = vunpack.c.l.b16 %v95
    %v237 = vunpack.c.h.b16 %v95
    %v238 = vunpack.c.l.b16 %v96
    %v239 = vunpack.c.h.b16 %v96
    %v240 = vunpack.c.l.b16 %v97
    %v241 = vunpack.c.h.b16 %v97
    %v242 = vunpack.c.l.b16 %v98
    %v243 = vunpack.c.h.b16 %v98
    %v244 = vunpack.c.l.b16 %v99
    %v245 = vunpack.c.h.b16 %v99
    %v246 = vunpack.c.l.b16 %v100
    %v247 = vunpack.c.h.b16 %v100
    %v248 = vunpack.c.l.b16 %v101
    %v249 = vunpack.c.h.b16 %v101
    %v250 = vunpack.c.l.b16 %v102
    %v251 = vunpack.c.h.b16 %v102
    %v252 = vunpack.c.l.b16 %v103
    %v253 = vunpack.c.h.b16 %v103
    %v254 = vunpack.c.l.b16 %v104
    %v255 = vunpack.c.h.b16 %v104
    %v256 = vunpack.c.l.b16 %v105
    %v257 = vunpack.c.h.b16 %v105
    %v258 = vunpack.c.l.b16 %v106
    %v259 = vunpack.c.h.b16 %v106
    %v260 = vunpack.c.l.b16 %v107
    %v261 = vunpack.c.h.b16 %v107
    %v262 = vunpack.c.l.b16 %v108
    %v263 = vunpack.c.h.b16 %v108
    %v264 = vunpack.c.l.b16 %v109
    %v265 = vunpack.c.h.b16 %v109
    %v266 = vunpack.c.l.b16 %v110
    %v267 = vunpack.c.h.b16 %v110
    %v268 = vunpack.c.l.b16 %v111
    %v269 = vunpack.c.h.b16 %v111
    %v270 = vunpack.c.l.b16 %v112
    %v271 = vunpack.c.h.b16 %v112
    %v272 = vunpack.c.l.b16 %v113
    %v273 = vunpack.c.h.b16 %v113
    %v274 = vunpack.c.l.b16 %v114
    %v275 = vunpack.c.h.b16 %v114
    %v276 = vunpack.c.l.b16 %v115
    %v277 = vunpack.c.h.b16 %v115
    %v278 = vunpack.c.l.b16 %v116
    %v279 = vunpack.c.h.b16 %v116
    %v280 = vunpack.c.l.b16 %v117
    %v281 = vunpack.c.h.b16 %v117
    %v282 = vunpack.c.l.b16 %v118
    %v283 = vunpack.c.h.b16 %v118
    %v284 = vunpack.c.l.b16 %v119
    %v285 = vunpack.c.h.b16 %v119
    %v286 = vunpack.c.l.b16 %v120
    %v287 = vunpack.c.h.b16 %v120
    %v288 = vunpack.c.l.b16 %v121
    %v289 = vunpack.c.h.b16 %v121
    %v290 = vunpack.c.l.b16 %v122
    %v291 = vunpack.c.h.b16 %v122
    %v292 = vunpack.c.l.b16 %v123
    %v293 = vunpack.c.h.b16 %v123
    %v294 = vunpack.c.l.b16 %v124
    %v295 = vunpack.c.h.b16 %v124
    %v296 = vunpack.c.l.b16 %v125
    %v297 = vunpack.c.h.b16 %v125
    %v298 = vunpack.c.l.b16 %v126
    %v299 = vunpack.c.h.b16 %v126
    %v300 = vunpack.c.l.b16 %v127
    %v301 = vunpack.c.h.b16 %v127
    %v302 = vunpack.c.l.b16 %v128
    %v303 = vunpack.c.h.b16 %v128
    %v304 = vunpack.c.l.b16 %v129
    %v305 = vunpack.c.h.b16 %v129
    %v306 = vunpack.c.l.b16 %v130
    %v307 = vunpack.c.h.b16 %v130
    %v308 = vunpack.c.l.b16 %v131
    %v309 = vunpack.c.h.b16 %v131
    %v310 = vunpack.c.l.b16 %v132
    %v311 = vunpack.c.h.b16 %v132
    %v312 = vunpack.c.l.b16 %v133
    %v313 = vunpack.c.h.b16 %v133
    %v314 = vunpack.c.l.b16 %v134
    %v315 = vunpack.c.h.b16 %v134
    %v316 = vunpack.c.l.b16 %v135
    %v317 = vunpack.c.h.b16 %v135
    %v318 = vunpack.c.l.b16 %v136
    %v319 = vunpack.c.h.b16 %v136
    %v320 = vunpack.c.l.b16 %v137
    %v321 = vunpack.c.h.b16 %v137
    %v322 = vunpack.c.l.b16 %v138
    %v323 = vunpack.c.h.b16 %v138
    %v324 = vunpack.c.l.b16 %v139
    %v325 = vunpack.c.h.b16 %v139
    %v326 = vunpack.c.l.b16 %v140
    %v327 = vunpack.c.h.b16 %v140
    %v328 = vunpack.c.l.b16 %v141
    %v329 = vunpack.c.h.b16 %v141
    %v330 = vunpack.c.l.b16 %v142
    %v331 = vunpack.c.h.b16 %v142
    %v332 = vunpack.c.l.b16 %v143
    %v333 = vunpack.c.h.b16 %v143
    %v334 = vunpack.c.l.b16 %v144
    %v335 = vunpack.c.h.b16 %v144
    %v336 = vunpack.c.l.b16 %v145
    %v337 = vunpack.c.h.b16 %v145
    %v338 = vunpack.c.l.b16 %v146
    %v339 = vunpack.c.h.b16 %v146
    %v340 = vunpack.c.l.b16 %v147
    %v341 = vunpack.c.h.b16 %v147
    %v342 = vunpack.c.l.b16 %v148
    %v343 = vunpack.c.h.b16 %v148
    %v344 = vunpack.c.l.b16 %v149
    %v345 = vunpack.c.h.b16 %v149
    %v346 = vunpack.c.l.b16 %v150
    %v347 = vunpack.c.h.b16 %v150
    %v348 = vunpack.c.l.b16 %v151
    %v349 = vunpack.c.h.b16 %v151
    %v350 = vunpack.c.l.b16 %v152
    %v351 = vunpack.c.h.b16 %v152
    %v352 = vunpack.c.l.b16 %v153
    %v353 = vunpack.c.h.b16 %v153
    %v354 = vunpack.c.l.b16 %v154
    %v355 = vunpack.c.h.b16 %v154
    %v356 = vunpack.c.l.b16 %v155
    %v357 = vunpack.c.h.b16 %v155
    %v358 = vunpack.c.l.b16 %v156
    %v359 = vunpack.c.h.b16 %v156
    %v360 = vunpack.c.l.b16 %v157
    %v361 = vunpack.c.h.b16 %v157
    %v362 = vpack.c.b16 %v236, %v234
    %v363 = vpack.c.b16 %v237, %v235
    %v364 = vpack.c.b16 %v240, %v238
    %v365 = vpack.c.b16 %v241, %v239
    %v366 = vpack.c.b16 %v244, %v242
    %v367 = vpack.c.b16 %v245, %v243
    %v368 = vpack.c.b16 %v248, %v246
    %v369 = vpack.c.b16 %v249, %v247
    %v370 = vpack.c.b16 %v252, %v250
    %v371 = vpack.c.b16 %v253, %v251
    %v372 = vpack.c.b16 %v256, %v254
    %v373 = vpack.c.b16 %v257, %v255
    %v374 = vpack.c.b16 %v260, %v258
    %v375 = vpack.c.b16 %v261, %v259
    %v376 = vpack.c.b16 %v264, %v262
    %v377 = vpack.c.b16 %v265, %v263
    %v378 = vpack.c.b16 %v268, %v266
    %v379 = vpack.c.b16 %v269, %v267
    %v380 = vpack.c.b16 %v272, %v270
    %v381 = vpack.c.b16 %v273, %v271
    %v382 = vpack.c.b16 %v276, %v274
    %v383 = vpack.c.b16 %v277, %v275
    %v384 = vpack.c.b16 %v280, %v278
    %v385 = vpack.c.b16 %v281, %v279
    %v386 = vpack.c.b16 %v284, %v282
    %v387 = vpack.c.b16 %v285, %v283
    %v388 = vpack.c.b16 %v288, %v286
    %v389 = vpack.c.b16 %v289, %v287
    %v390 = vpack.c.b16 %v292, %v290
    %v391 = vpack.c.b16 %v293, %v291
    %v392 = vpack.c.b16 %v296, %v294
    %v393 = vpack.c.b16 %v297, %v295
    %v394 = vpack.c.b16 %v300, %v298
    %v395 = vpack.c.b16 %v301, %v299
    %v396 = vpack.c.b16 %v304, %v302
    %v397 = vpack.c.b16 %v305, %v303
    %v398 = vpack.c.b16 %v308, %v306
    %v399 = vpack.c.b16 %v309, %v307
    %v400 = vpack.c.b16 %v312, %v310
    %v401 = vpack.c.b16 %v313, %v311
    %v402 = vpack.c.b16 %v316, %v314
    %v403 = vpack.c.b16 %v317, %v315
    %v404 = vpack.c.b16 %v320, %v318
    %v405 = vpack.c.b16 %v321, %v319
    %v406 = vpack.c.b16 %v324, %v322
    %v407 = vpack.c.b16 %v325, %v323
    %v408 = vpack.c.b16 %v328, %v326
    %v409 = vpack.c.b16 %v329, %v327
    %v410 = vpack.c.b16 %v332, %v330
    %v411 = vpack.c.b16 %v333, %v331
    %v412 = vpack.c.b16 %v336, %v334
    %v413 = vpack.c.b16 %v337, %v335
    %v414 = vpack.c.b16 %v340, %v338
    %v415 = vpack.c.b16 %v341, %v339
    %v416 = vpack.c.b16 %v344, %v342
    %v417 = vpack.c.b16 %v345, %v343
    %v418 = vpack.c.b16 %v348, %v346
    %v419 = vpack.c.b16 %v349, %v347
    %v420 = vpack.c.b16 %v352, %v350
    %v421 = vpack.c.b16 %v353, %v351
    %v422 = vpack.c.b16 %v356, %v354
    %v423 = vpack.c.b16 %v357, %v355
    %v424 = vpack.c.b16 %v360, %v358
    %v425 = vpack.c.b16 %v361, %v359
    %490 = vmatprep.subr.bf16.mxu0 %v363
    %491 = vmatpush1.bf16.msra.mxu0 %v362
    %492 = vmatprep.subr.bf16.mxu0 %v365
    %493 = vmatpush1.bf16.msra.mxu0 %v364
    %494 = vmatprep.subr.bf16.mxu0 %v367
    %495 = vmatpush1.bf16.msra.mxu0 %v366
    %496 = vmatprep.subr.bf16.mxu0 %v369
    %497 = vmatpush1.bf16.msra.mxu0 %v368
    %498 = vmatprep.subr.bf16.mxu0 %v371
    %499 = vmatpush1.bf16.msra.mxu0 %v370
    %500 = vmatprep.subr.bf16.mxu0 %v373
    %501 = vmatpush1.bf16.msra.mxu0 %v372
    %502 = vmatprep.subr.bf16.mxu0 %v375
    %503 = vmatpush1.bf16.msra.mxu0 %v374
    %504 = vmatprep.subr.bf16.mxu0 %v377
    %505 = vmatpush1.bf16.msra.mxu0 %v376
    %506 = vmatprep.subr.bf16.mxu0 %v379
    %507 = vmatpush1.bf16.msra.mxu0 %v378
    %508 = vmatprep.subr.bf16.mxu0 %v381
    %509 = vmatpush1.bf16.msra.mxu0 %v380
    %510 = vmatprep.subr.bf16.mxu0 %v383
    %511 = vmatpush1.bf16.msra.mxu0 %v382
    %512 = vmatprep.subr.bf16.mxu0 %v385
    %513 = vmatpush1.bf16.msra.mxu0 %v384
    %514 = vmatprep.subr.bf16.mxu0 %v387
    %515 = vmatpush1.bf16.msra.mxu0 %v386
    %516 = vmatprep.subr.bf16.mxu0 %v389
    %517 = vmatpush1.bf16.msra.mxu0 %v388
    %518 = vmatprep.subr.bf16.mxu0 %v391
    %519 = vmatpush1.bf16.msra.mxu0 %v390
    %520 = vmatprep.subr.bf16.mxu0 %v393
    %521 = vmatpush1.bf16.msra.mxu0 %v392
    %522 = vmatprep.mubr.bf16.mxu0 %v91
    %523 = vmatmul.mubr.bf16.gmra.mrb[0].mxu0 %v90
    %v524 = vpop.f32.mrb[0].mxu0
    %v525 = vadd.f32 %v163, %v524
    %v526 = vpop.f32.mrb[0].mxu0
    %v527 = vadd.f32 %v167, %v526
    %v528 = vpop.f32.mrb[0].mxu0
    %v529 = vadd.f32 %v163, %v528
    %v530 = vpop.f32.mrb[0].mxu0
    %v531 = vadd.f32 %v167, %v530
    %532 = vdwg.mxu0
    %533 = vmatprep.subr.bf16.mxu0 %v395
    %534 = vmatpush1.bf16.msra.mxu0 %v394
    %535 = vmatprep.subr.bf16.mxu0 %v397
    %536 = vmatpush1.bf16.msra.mxu0 %v396
    %537 = vmatprep.subr.bf16.mxu0 %v399
    %538 = vmatpush1.bf16.msra.mxu0 %v398
    %539 = vmatprep.subr.bf16.mxu0 %v401
    %540 = vmatpush1.bf16.msra.mxu0 %v400
    %541 = vmatprep.subr.bf16.mxu0 %v403
    %542 = vmatpush1.bf16.msra.mxu0 %v402
    %543 = vmatprep.subr.bf16.mxu0 %v405
    %544 = vmatpush1.bf16.msra.mxu0 %v404
    %545 = vmatprep.subr.bf16.mxu0 %v407
    %546 = vmatpush1.bf16.msra.mxu0 %v406
    %547 = vmatprep.subr.bf16.mxu0 %v409
    %548 = vmatpush1.bf16.msra.mxu0 %v408
    %549 = vmatprep.subr.bf16.mxu0 %v411
    %550 = vmatpush1.bf16.msra.mxu0 %v410
    %551 = vmatprep.subr.bf16.mxu0 %v413
    %552 = vmatpush1.bf16.msra.mxu0 %v412
    %553 = vmatprep.subr.bf16.mxu0 %v415
    %554 = vmatpush1.bf16.msra.mxu0 %v414
    %555 = vmatprep.subr.bf16.mxu0 %v417
    %556 = vmatpush1.bf16.msra.mxu0 %v416
    %557 = vmatprep.subr.bf16.mxu0 %v419
    %558 = vmatpush1.bf16.msra.mxu0 %v418
    %559 = vmatprep.subr.bf16.mxu0 %v421
    %560 = vmatpush1.bf16.msra.mxu0 %v420
    %561 = vmatprep.subr.bf16.mxu0 %v423
    %562 = vmatpush1.bf16.msra.mxu0 %v422
    %563 = vmatprep.subr.bf16.mxu0 %v425
    %564 = vmatpush1.bf16.msra.mxu0 %v424
    %565 = vmatprep.mubr.bf16.mxu0 %v93
    %566 = vmatmul.mubr.bf16.gmra.mrb[0].mxu0 %v92
    %v567 = vpop.f32.mrb[0].mxu0
    %v568 = vadd.f32 %v525, %v567
    %v569 = vpop.f32.mrb[0].mxu0
    %v570 = vadd.f32 %v527, %v569
    %v571 = vpop.f32.mrb[0].mxu0
    %v572 = vadd.f32 %v529, %v571
    %v573 = vpop.f32.mrb[0].mxu0
    %v574 = vadd.f32 %v531, %v573
    %575 = vdwg.mxu0
    %vm576 = vcmp.gt.f32.partialorder %v568, 0.0
    %vm577 = vcmp.gt.f32.partialorder %v570, 0.0
    %vm578 = vcmp.gt.f32.partialorder %v572, 0.0
    %vm579 = vcmp.gt.f32.partialorder %v574, 0.0
    %v580 = vmul.f32 %v568, 0.2
    %v581 = vmul.f32 %v570, 0.2
    %v582 = vmul.f32 %v572, 0.2
    %v583 = vmul.f32 %v574, 0.2
    %v584 = vsel %vm576, %v568, %v580
    %v585 = vsel %vm577, %v570, %v581
    %v586 = vsel %vm578, %v572, %v582
    %v587 = vsel %vm579, %v574, %v583
    %v588 = vpack.c.bf16 %v586, %v584
    %v589 = vpack.c.bf16 %v587, %v585
    %v590 = vld [vmem:[#allocation6] sm:$0xf]
    %v591 = vld [vmem:[#allocation6 + $0x4] sm:$0xf]
    %v592 = vld [vmem:[#allocation6 + $0x8] sm:$0xf]
    %v593 = vld [vmem:[#allocation6 + $0xc] sm:$0xf]
    %v594 = vld [vmem:[#allocation6 + $0x10] sm:$0xf]
    %v595 = vld [vmem:[#allocation6 + $0x14] sm:$0xf]
    %v596 = vld [vmem:[#allocation6 + $0x18] sm:$0xf]
    %v597 = vld [vmem:[#allocation6 + $0x1c] sm:$0xf]
    %v598 = vld [vmem:[#allocation6 + $0x20] sm:$0xf]
    %v599 = vld [vmem:[#allocation6 + $0x24] sm:$0xf]
    %v600 = vld [vmem:[#allocation6 + $0x28] sm:$0xf]
    %v601 = vld [vmem:[#allocation6 + $0x2c] sm:$0xf]
    %v602 = vld [vmem:[#allocation6 + $0x30] sm:$0xf]
    %v603 = vld [vmem:[#allocation6 + $0x34] sm:$0xf]
    %v604 = vld [vmem:[#allocation6 + $0x38] sm:$0xf]
    %v605 = vld [vmem:[#allocation6 + $0x3c] sm:$0xf]
    %v606 = vld [vmem:[#allocation6 + $0x40] sm:$0xf]
    %v607 = vld [vmem:[#allocation6 + $0x44] sm:$0xf]
    %v608 = vld [vmem:[#allocation6 + $0x48] sm:$0xf]
    %v609 = vld [vmem:[#allocation6 + $0x4c] sm:$0xf]
    %v610 = vld [vmem:[#allocation6 + $0x50] sm:$0xf]
    %v611 = vld [vmem:[#allocation6 + $0x54] sm:$0xf]
    %v612 = vld [vmem:[#allocation6 + $0x58] sm:$0xf]
    %v613 = vld [vmem:[#allocation6 + $0x5c] sm:$0xf]
    %v614 = vld [vmem:[#allocation6 + $0x60] sm:$0xf]
    %v615 = vld [vmem:[#allocation6 + $0x64] sm:$0xf]
    %v616 = vld [vmem:[#allocation6 + $0x68] sm:$0xf]
    %v617 = vld [vmem:[#allocation6 + $0x6c] sm:$0xf]
    %v618 = vld [vmem:[#allocation6 + $0x70] sm:$0xf]
    %v619 = vld [vmem:[#allocation6 + $0x74] sm:$0xf]
    %v620 = vld [vmem:[#allocation6 + $0x78] sm:$0xf]
    %v621 = vld [vmem:[#allocation6 + $0x7c] sm:$0xf]
    %v622 = vld [vmem:[%s4] sm:$0x1]
    %v624 = vlaneseq
    %v625 = vshrl.u32 %v624, 7
    %v626 = vsub.s32 0, %v625
    %v627 = vrot.slane %v622, %v626
    %v661 = vunpack.c.l.b16 %v590
    %v662 = vunpack.c.l.b16 %v591
    %v663 = vunpack.c.l.b16 %v592
    %v664 = vunpack.c.l.b16 %v593
    %v665 = vunpack.c.l.b16 %v594
    %v666 = vunpack.c.l.b16 %v595
    %v667 = vunpack.c.l.b16 %v596
    %v668 = vunpack.c.l.b16 %v597
    %v669 = vunpack.c.l.b16 %v598
    %v670 = vunpack.c.l.b16 %v599
    %v671 = vunpack.c.l.b16 %v600
    %v672 = vunpack.c.l.b16 %v601
    %v673 = vunpack.c.l.b16 %v602
    %v674 = vunpack.c.l.b16 %v603
    %v675 = vunpack.c.l.b16 %v604
    %v676 = vunpack.c.l.b16 %v605
    %v677 = vunpack.c.l.b16 %v606
    %v678 = vunpack.c.l.b16 %v607
    %v679 = vunpack.c.l.b16 %v608
    %v680 = vunpack.c.l.b16 %v609
    %v681 = vunpack.c.l.b16 %v610
    %v682 = vunpack.c.l.b16 %v611
    %v683 = vunpack.c.l.b16 %v612
    %v684 = vunpack.c.l.b16 %v613
    %v685 = vunpack.c.l.b16 %v614
    %v686 = vunpack.c.l.b16 %v615
    %v687 = vunpack.c.l.b16 %v616
    %v688 = vunpack.c.l.b16 %v617
    %v689 = vunpack.c.l.b16 %v618
    %v690 = vunpack.c.l.b16 %v619
    %v691 = vunpack.c.l.b16 %v620
    %v692 = vunpack.c.l.b16 %v621
    %v693 = vpack.c.b16 %v662, %v661
    %v694 = vpack.c.b16 %v664, %v663
    %v695 = vpack.c.b16 %v666, %v665
    %v696 = vpack.c.b16 %v668, %v667
    %v697 = vpack.c.b16 %v670, %v669
    %v698 = vpack.c.b16 %v672, %v671
    %v699 = vpack.c.b16 %v674, %v673
    %v700 = vpack.c.b16 %v676, %v675
    %v701 = vpack.c.b16 %v678, %v677
    %v702 = vpack.c.b16 %v680, %v679
    %v703 = vpack.c.b16 %v682, %v681
    %v704 = vpack.c.b16 %v684, %v683
    %v705 = vpack.c.b16 %v686, %v685
    %v706 = vpack.c.b16 %v688, %v687
    %v707 = vpack.c.b16 %v690, %v689
    %v708 = vpack.c.b16 %v692, %v691
    %725 = vmatprep.subr.bf16.mxu0 0
    %726 = vmatpush1.bf16.msra.mxu0 %v693
    %727 = vmatprep.subr.bf16.mxu0 0
    %728 = vmatpush1.bf16.msra.mxu0 %v694
    %729 = vmatprep.subr.bf16.mxu0 0
    %730 = vmatpush1.bf16.msra.mxu0 %v695
    %731 = vmatprep.subr.bf16.mxu0 0
    %732 = vmatpush1.bf16.msra.mxu0 %v696
    %733 = vmatprep.subr.bf16.mxu0 0
    %734 = vmatpush1.bf16.msra.mxu0 %v697
    %735 = vmatprep.subr.bf16.mxu0 0
    %736 = vmatpush1.bf16.msra.mxu0 %v698
    %737 = vmatprep.subr.bf16.mxu0 0
    %738 = vmatpush1.bf16.msra.mxu0 %v699
    %739 = vmatprep.subr.bf16.mxu0 0
    %740 = vmatpush1.bf16.msra.mxu0 %v700
    %741 = vmatprep.subr.bf16.mxu0 0
    %742 = vmatpush1.bf16.msra.mxu0 %v701
    %743 = vmatprep.subr.bf16.mxu0 0
    %744 = vmatpush1.bf16.msra.mxu0 %v702
    %745 = vmatprep.subr.bf16.mxu0 0
    %746 = vmatpush1.bf16.msra.mxu0 %v703
    %747 = vmatprep.subr.bf16.mxu0 0
    %748 = vmatpush1.bf16.msra.mxu0 %v704
    %749 = vmatprep.subr.bf16.mxu0 0
    %750 = vmatpush1.bf16.msra.mxu0 %v705
    %751 = vmatprep.subr.bf16.mxu0 0
    %752 = vmatpush1.bf16.msra.mxu0 %v706
    %753 = vmatprep.subr.bf16.mxu0 0
    %754 = vmatpush1.bf16.msra.mxu0 %v707
    %755 = vmatprep.subr.bf16.mxu0 0
    %756 = vmatpush1.bf16.msra.mxu0 %v708
    %757 = vmatprep.mubr.bf16.mxu0 %v589
    %758 = vmatmul.mubr.bf16.gmra.mrb[0].mxu0 %v588
    %v759 = vpop.f32.mrb[0].mxu0
    %v760 = vadd.f32 %v627, %v759
    %v761 = vpop.f32.mrb[0].mxu0
    %v762 = vpop.f32.mrb[0].mxu0
    %v763 = vadd.f32 %v627, %v762
    %v764 = vpop.f32.mrb[0].mxu0
    %765 = vdwg.mxu0
    %vm766 = vcmp.gt.f32.partialorder %v760, 0.0
    %vm767 = vcmp.gt.f32.partialorder %v763, 0.0
    %v768 = vmul.f32 %v760, 0.2
    %v769 = vmul.f32 %v763, 0.2
    %v770 = vsel %vm766, %v760, %v768
    %v771 = vsel %vm767, %v763, %v769
    %v772 = vpack.c.bf16 %v771, %v770
    %v773 = vld [vmem:[#allocation7] sm:$0xf]
    %v774 = vld [vmem:[#allocation7 + $0x4] sm:$0xf]
    %v775 = vld [vmem:[#allocation7 + $0x8] sm:$0xf]
    %v776 = vld [vmem:[#allocation7 + $0xc] sm:$0xf]
    %v777 = vld [vmem:[#allocation7 + $0x10] sm:$0xf]
    %v778 = vld [vmem:[#allocation7 + $0x14] sm:$0xf]
    %v779 = vld [vmem:[#allocation7 + $0x18] sm:$0xf]
    %v780 = vld [vmem:[#allocation7 + $0x1c] sm:$0xf]
    %v781 = vld [vmem:[#allocation7 + $0x20] sm:$0xf]
    %v782 = vld [vmem:[#allocation7 + $0x24] sm:$0xf]
    %v783 = vld [vmem:[#allocation7 + $0x28] sm:$0xf]
    %v784 = vld [vmem:[#allocation7 + $0x2c] sm:$0xf]
    %v785 = vld [vmem:[#allocation7 + $0x30] sm:$0xf]
    %v786 = vld [vmem:[#allocation7 + $0x34] sm:$0xf]
    %v787 = vld [vmem:[#allocation7 + $0x38] sm:$0xf]
    %v788 = vld [vmem:[#allocation7 + $0x3c] sm:$0xf]
    %v789 = vld [vmem:[%s6] sm:$0x1]
    %v791 = vlaneseq
    %v792 = vshrl.u32 %v791, 7
    %v793 = vsub.s32 0, %v792
    %v794 = vrot.slane %v789, %v793
    %v812 = vunpack.c.l.b16 %v773
    %v813 = vunpack.c.l.b16 %v774
    %v814 = vunpack.c.l.b16 %v775
    %v815 = vunpack.c.l.b16 %v776
    %v816 = vunpack.c.l.b16 %v777
    %v817 = vunpack.c.l.b16 %v778
    %v818 = vunpack.c.l.b16 %v779
    %v819 = vunpack.c.l.b16 %v780
    %v820 = vunpack.c.l.b16 %v781
    %v821 = vunpack.c.l.b16 %v782
    %v822 = vunpack.c.l.b16 %v783
    %v823 = vunpack.c.l.b16 %v784
    %v824 = vunpack.c.l.b16 %v785
    %v825 = vunpack.c.l.b16 %v786
    %v826 = vunpack.c.l.b16 %v787
    %v827 = vunpack.c.l.b16 %v788
    %v828 = vpack.c.b16 %v813, %v812
    %v829 = vpack.c.b16 %v815, %v814
    %v830 = vpack.c.b16 %v817, %v816
    %v831 = vpack.c.b16 %v819, %v818
    %v832 = vpack.c.b16 %v821, %v820
    %v833 = vpack.c.b16 %v823, %v822
    %v834 = vpack.c.b16 %v825, %v824
    %v835 = vpack.c.b16 %v827, %v826
    %844 = vmatprep.subr.bf16.mxu0 0
    %845 = vmatpush1.bf16.msra.mxu0 %v828
    %846 = vmatprep.subr.bf16.mxu0 0
    %847 = vmatpush1.bf16.msra.mxu0 %v829
    %848 = vmatprep.subr.bf16.mxu0 0
    %849 = vmatpush1.bf16.msra.mxu0 %v830
    %850 = vmatprep.subr.bf16.mxu0 0
    %851 = vmatpush1.bf16.msra.mxu0 %v831
    %852 = vmatprep.subr.bf16.mxu0 0
    %853 = vmatpush1.bf16.msra.mxu0 %v832
    %854 = vmatprep.subr.bf16.mxu0 0
    %855 = vmatpush1.bf16.msra.mxu0 %v833
    %856 = vmatprep.subr.bf16.mxu0 0
    %857 = vmatpush1.bf16.msra.mxu0 %v834
    %858 = vmatprep.subr.bf16.mxu0 0
    %859 = vmatpush1.bf16.msra.mxu0 %v835
    %860 = vmatprep.subr.bf16.mxu0 0
    %861 = vmatpush1.bf16.msra.mxu0 0
    %862 = vmatprep.subr.bf16.mxu0 0
    %863 = vmatpush1.bf16.msra.mxu0 0
    %864 = vmatprep.subr.bf16.mxu0 0
    %865 = vmatpush1.bf16.msra.mxu0 0
    %866 = vmatprep.subr.bf16.mxu0 0
    %867 = vmatpush1.bf16.msra.mxu0 0
    %868 = vmatprep.subr.bf16.mxu0 0
    %869 = vmatpush1.bf16.msra.mxu0 0
    %870 = vmatprep.subr.bf16.mxu0 0
    %871 = vmatpush1.bf16.msra.mxu0 0
    %872 = vmatprep.subr.bf16.mxu0 0
    %873 = vmatpush1.bf16.msra.mxu0 0
    %874 = vmatprep.subr.bf16.mxu0 0
    %875 = vmatpush1.bf16.msra.mxu0 0
    %876 = vmatprep.mubr.bf16.mxu0 0
    %877 = vmatmul.mubr.bf16.gmra.mrb[0].mxu0 %v772
    %v878 = vpop.f32.mrb[0].mxu0
    %v879 = vadd.f32 %v794, %v878
    %v880 = vpop.f32.mrb[0].mxu0
    %v881 = vpop.f32.mrb[0].mxu0
    %v882 = vadd.f32 %v794, %v881
    %v883 = vpop.f32.mrb[0].mxu0
    %884 = vdwg.mxu0
    %vm885 = vcmask 23552
    %886 = vst.msk [vmem:[%s7] sm:$0xff] %vm885, %v879
    %887 = vst.msk [vmem:[%s7 + $0x8] sm:$0xff] %vm885, %v882
    // Predicated region
    $region46: #{type_classifier.1} parent=1 // pred_check
      _
    $region47: #{type_classifier.1} parent=1 // pred_check_branch
      %889 = sbr.rel (0) target = $region49
    $region48: #{type_classifier.1} parent=1 // pred_region
      _
    $region49: #{type_classifier.1} parent=1 // pred_fallthru
      _
    // Predicated region
    $region50: #{type_classifier.1} parent=1 // pred_check
      _
    $region51: #{type_classifier.1} parent=1 // pred_check_branch
      %891 = sbr.rel (0) target = $region53
    $region52: #{type_classifier.1} parent=1 // pred_region
      _
    $region53: #{type_classifier.1} parent=1 // pred_fallthru
      _
    %892 = vsyncpa [#allocation3], 1
    %893 = vsyncpa [#allocation5], 1
    %894 = vsyncpa [#allocation8], 1

</llo_original>
